<compile_context>
chip_gen: v7x
topology: tpu7x:2x2x1
jax: 0.10.0
libtpu: 0.0.40
codegen_flags: <defaults>
</compile_context>

<pallas_src>
import functools

import jax
import jax.numpy as jnp
from jax.experimental import pallas as pl
from jax.experimental.pallas import tpu as pltpu

_LANES = 128
_MAX_TR = 2048      # rows (sublanes) per reduction grid step (1 MiB f32 block)
_MAX_TR_EW = 4096   # rows per elementwise ('none' pass 2) grid step
_NSPLIT = 2         # leading 'parallel' axis: dual-TensorCore split on v7x


def _round_up(x, m):
    return -(-x // m) * m


def _fold8(x, tr):
    """(tr, 128) -> (8, 128) partial sum using vreg-aligned VALU adds only."""
    return jnp.sum(x.reshape(tr // 8, 8, _LANES), axis=0)


def _valid_mask(flat_block, tr, n_valid):
    """Boolean (tr, 128) mask: flat element index < n_valid."""
    base = flat_block * (tr * _LANES)
    row_ids = jax.lax.broadcasted_iota(jnp.int32, (tr, _LANES), 0)
    lane_ids = jax.lax.broadcasted_iota(jnp.int32, (tr, _LANES), 1)
    return (base + row_ids * _LANES + lane_ids) < n_valid


def _sums3_kernel(pred_ref, targ_ref, lw_ref, out_ref,
                  *, n_valid, tr, spc, needs_mask):
    """Per-core accumulate [sum((p-t)^2), sum(exp(-lw)), sum(lw)] ('mean')."""
    c = pl.program_id(0)
    j = pl.program_id(1)

    @pl.when(j == 0)
    def _init():
        out_ref[...] = jnp.zeros_like(out_ref)

    p = pred_ref[...].astype(jnp.float32)
    t = targ_ref[...].astype(jnp.float32)
    lw = lw_ref[...].astype(jnp.float32)

    def _accumulate(valid):
        if valid is None:
            pm, tm, lwm = p, t, lw
            ew = jnp.exp(-lwm)
        else:
            zero = jnp.float32(0.0)
            # Zero inputs *before* the square / exp so garbage overhang never
            # reaches a transcendental; exp's output is masked too (exp(0)=1).
            pm = jnp.where(valid, p, zero)
            tm = jnp.where(valid, t, zero)
            lwm = jnp.where(valid, lw, zero)
            ew = jnp.where(valid, jnp.exp(-lwm), zero)
        d = pm - tm
        out_ref[0, 0] += _fold8(d * d, tr)
        out_ref[0, 1] += _fold8(ew, tr)
        out_ref[0, 2] += _fold8(lwm, tr)

    if needs_mask:
        flat_block = c * spc + j
        block_end = (flat_block + 1) * (tr * _LANES)

        @pl.when(block_end <= n_valid)
        def _interior():
            _accumulate(None)

        @pl.when(block_end > n_valid)
        def _tail():
            _accumulate(_valid_mask(flat_block, tr, n_valid))
    else:
        _accumulate(None)


def _sqsum_kernel(pred_ref, targ_ref, out_ref, *, n_valid, tr, spc, needs_mask):
    """Per-core accumulate sum((p-t)^2) ('none' path first pass)."""
    c = pl.program_id(0)
    j = pl.program_id(1)

    @pl.when(j == 0)
    def _init():
        out_ref[...] = jnp.zeros_like(out_ref)

    p = pred_ref[...].astype(jnp.float32)
    t = targ_ref[...].astype(jnp.float32)

    def _accumulate(valid):
        d = p - t
        sq = d * d
        if valid is not None:
            sq = jnp.where(valid, sq, jnp.float32(0.0))
        out_ref[0] += _fold8(sq, tr)

    if needs_mask:
        flat_block = c * spc + j
        block_end = (flat_block + 1) * (tr * _LANES)

        @pl.when(block_end <= n_valid)
        def _interior():
            _accumulate(None)

        @pl.when(block_end > n_valid)
        def _tail():
            _accumulate(_valid_mask(flat_block, tr, n_valid))
    else:
        _accumulate(None)


def _elementwise_kernel(mse_ref, lw_ref, out_ref):
    """out = exp(-log_weight) * mse + log_weight  (reduction='none' path)."""
    lw = lw_ref[...].astype(jnp.float32)
    out_ref[...] = (jnp.exp(-lw) * mse_ref[0] + lw).astype(out_ref.dtype)


def _flatten_lane_major(x):
    """Flatten row-major to (rows, 128) with rows % 8 == 0.

    Pads with zeros up to a multiple of 8*128 elements (free reshape — no
    copy — whenever numel is already a multiple of 1024, the common NCHW
    case). Keeping rows a multiple of 8 means every row tile is vreg-aligned
    and never larger than the array itself.
    """
    flat = x.reshape(-1)
    n = flat.shape[0]
    pad = (-n) % (8 * _LANES)
    if pad:
        flat = jnp.pad(flat, (0, pad))
    return flat.reshape(-1, _LANES), n


def is_loss(source, target, log_weight, reduction="mean"):
    assert source.shape == target.shape == log_weight.shape, (
        "ISLoss expects source/target/log_weight with matching shapes")

    pred2d, n = _flatten_lane_major(source)
    targ2d, _ = _flatten_lane_major(target)
    lw2d, _ = _flatten_lane_major(log_weight)
    rows = pred2d.shape[0]

    # --- reduction-pass tiling: (ncores, steps_per_core) grid of (tr,128) ---
    tr = min(_MAX_TR, rows)                # rows is a multiple of 8, so is tr
    nblocks = -(-rows // tr)
    ncores = _NSPLIT if nblocks >= _NSPLIT else 1
    spc = -(-nblocks // ncores)            # row-blocks per core
    # Mask needed when the tiled extent exceeds the number of valid elements
    # (zero pad, partial final row-block, or clamped phantom blocks).
    needs_mask = (ncores * spc * tr * _LANES) != n

    if ncores * spc > nblocks:             # phantom blocks: clamp + mask out
        def block_im(c, j):
            return (jnp.minimum(c * spc + j, nblocks - 1), 0)
    else:
        def block_im(c, j):
            return (c * spc + j, 0)

    in_block = pl.BlockSpec((tr, _LANES), block_im)
    reduce_params = pltpu.CompilerParams(
        dimension_semantics=("parallel", "arbitrary"))
    nf = jnp.float32(n)

    if reduction == "mean":
        parts = pl.pallas_call(
            functools.partial(_sums3_kernel, n_valid=n, tr=tr, spc=spc,
                              needs_mask=needs_mask),
            out_shape=jax.ShapeDtypeStruct((ncores, 3, 8, _LANES), jnp.float32),
            grid_spec=pltpu.PrefetchScalarGridSpec(
                num_scalar_prefetch=0,
                grid=(ncores, spc),
                in_specs=[in_block, in_block, in_block],
                out_specs=pl.BlockSpec((1, 3, 8, _LANES),
                                       lambda c, j: (c, 0, 0, 0)),
            ),
            compiler_params=reduce_params,
        )(pred2d, targ2d, lw2d)
        totals = jnp.sum(parts, axis=(0, 2, 3))   # [sum_sq, sum_exp, sum_lw]
        mse = totals[0] / nf
        return (mse * totals[1] + totals[2]) / nf

    # reduction == 'none': pass 1 streams only pred/target (sum of squares).
    parts = pl.pallas_call(
        functools.partial(_sqsum_kernel, n_valid=n, tr=tr, spc=spc,
                          needs_mask=needs_mask),
        out_shape=jax.ShapeDtypeStruct((ncores, 8, _LANES), jnp.float32),
        grid_spec=pltpu.PrefetchScalarGridSpec(
            num_scalar_prefetch=0,
            grid=(ncores, spc),
            in_specs=[in_block, in_block],
            out_specs=pl.BlockSpec((1, 8, _LANES), lambda c, j: (c, 0, 0)),
        ),
        compiler_params=reduce_params,
    )(pred2d, targ2d)
    mse_arr = (jnp.sum(parts) / nf).reshape(1).astype(jnp.float32)

    # --- pass 2: pure streaming map; bigger tile (only 1 in + 1 out stream),
    #     full-width 128-lane blocks are HBM-contiguous, output in input dtype.
    tr2 = min(_MAX_TR_EW, rows)
    steps2 = -(-rows // tr2)
    out2d = pl.pallas_call(
        _elementwise_kernel,
        out_shape=jax.ShapeDtypeStruct(lw2d.shape, log_weight.dtype),
        grid_spec=pltpu.PrefetchScalarGridSpec(
            num_scalar_prefetch=1,      # mse scalar lands in SMEM
            grid=(steps2,),
            in_specs=[pl.BlockSpec((tr2, _LANES), lambda i, mse: (i, 0))],
            out_specs=pl.BlockSpec((tr2, _LANES), lambda i, mse: (i, 0)),
        ),
        compiler_params=pltpu.CompilerParams(dimension_semantics=("parallel",)),
    )(mse_arr, lw2d)
    return out2d.reshape(-1)[:n].reshape(log_weight.shape)


def _reference(source, target, log_weight, reduction="mean"):
    weight = jnp.exp(-log_weight)
    mse = jnp.mean((source - target) ** 2)
    if reduction == "mean":
        return jnp.mean(weight * mse + log_weight)
    return weight * mse + log_weight


if __name__ == "__main__":
    # ISLoss has no learnable parameters; inputs are source, target, log_weight.
    key = jax.random.PRNGKey(0)
    k1, k2, k3 = jax.random.split(key, 3)

    def check(shape, rtol=1e-5, atol=1e-5):
        s = jax.random.normal(k1, shape, dtype=jnp.float32)
        t = jax.random.normal(k2, shape, dtype=jnp.float32)
        w = 0.5 * jax.random.normal(k3, shape, dtype=jnp.float32)
        got_mean = jax.block_until_ready(is_loss(s, t, w, "mean"))
        ref_mean = _reference(s, t, w, "mean")
        assert jnp.allclose(got_mean, ref_mean, rtol=rtol, atol=atol), (
            shape, "mean", got_mean, ref_mean)
        got_none = jax.block_until_ready(is_loss(s, t, w, "none"))
        ref_none = _reference(s, t, w, "none")
        assert jnp.allclose(got_none, ref_none, rtol=rtol, atol=atol), (
            shape, "none")

    # Primary small test consistent with NCHW usage.
    check((2, 4, 16, 16))
    # Ragged shape: zero pad + in-kernel tail masking, single block.
    check((2, 3, 5, 7))
    # Multi-block, 2-way 'parallel' split, partial final block (garbage
    # overhang masked before exp/square).
    check((10, 2, 128, 128), rtol=1e-4)
    # Odd block count: phantom block on core 1 is index-clamped and masked.
    check((3, 16, 128, 128), rtol=1e-4)

    print("KERNEL_OK")
</pallas_src>

<mosaic_0001>
module attributes {stable_mosaic.version = 11 : i64} {
  func.func @_sums3_kernel(%arg0: i32, %arg1: i32, %arg2: memref<16x128xf32, #tpu.memory_space<vmem>>, %arg3: memref<16x128xf32, #tpu.memory_space<vmem>>, %arg4: memref<16x128xf32, #tpu.memory_space<vmem>>, %arg5: memref<1x3x8x128xf32, #tpu.memory_space<vmem>>) attributes {dimension_semantics = [#tpu.dimension_semantics<parallel>, #tpu.dimension_semantics<arbitrary>], iteration_bounds = array<i64: 1, 1>, scalar_prefetch = 0 : i64, scratch_operands = 0 : i64, tpu.core_type = #tpu.core_type<tc>, window_params = [{transform_indices = @transform_0, window_bounds = array<i64: 16, 128>}, {transform_indices = @transform_1, window_bounds = array<i64: 16, 128>}, {transform_indices = @transform_2, window_bounds = array<i64: 16, 128>}, {transform_indices = @transform_3, window_bounds = array<i64: 1, 3, 8, 128>}]} {
    %c0_i32 = arith.constant 0 : i32
    %0 = arith.cmpi eq, %arg1, %c0_i32 : i32
    %1 = arith.extui %0 : i1 to i32
    %c0_i32_0 = arith.constant 0 : i32
    %2 = arith.cmpi ne, %1, %c0_i32_0 : i32
    scf.if %2 {
      %cst_31 = arith.constant 0.000000e+00 : f32
      %35 = vector.broadcast %cst_31 : f32 to vector<1x3x8x128xf32>
      %c0_32 = arith.constant 0 : index
      %c0_33 = arith.constant 0 : index
      %c0_34 = arith.constant 0 : index
      %c0_35 = arith.constant 0 : index
      %36 = vector.load %arg5[%c0_32, %c0_33, %c0_34, %c0_35] : memref<1x3x8x128xf32, #tpu.memory_space<vmem>>, vector<1x3x8x128xf32>
      tpu.vector_store %arg5[%c0_32, %c0_33, %c0_34, %c0_35], %35 {strides = array<i32>} : memref<1x3x8x128xf32, #tpu.memory_space<vmem>>, vector<1x3x8x128xf32>,
    } else {
    }
    %c0 = arith.constant 0 : index
    %c0_1 = arith.constant 0 : index
    %3 = vector.load %arg2[%c0, %c0_1] : memref<16x128xf32, #tpu.memory_space<vmem>>, vector<16x128xf32>
    %c0_2 = arith.constant 0 : index
    %c0_3 = arith.constant 0 : index
    %4 = vector.load %arg3[%c0_2, %c0_3] : memref<16x128xf32, #tpu.memory_space<vmem>>, vector<16x128xf32>
    %c0_4 = arith.constant 0 : index
    %c0_5 = arith.constant 0 : index
    %5 = vector.load %arg4[%c0_4, %c0_5] : memref<16x128xf32, #tpu.memory_space<vmem>>, vector<16x128xf32>
    %cst = arith.constant 0.000000e+00 : f32
    %6 = vector.broadcast %cst : f32 to vector<16x128xf32>
    %7 = arith.subf %6, %5 : vector<16x128xf32>
    %8 = math.exp %7 : vector<16x128xf32>
    %9 = arith.subf %3, %4 : vector<16x128xf32>
    %c0_6 = arith.constant 0 : index
    %c0_7 = arith.constant 0 : index
    %c0_8 = arith.constant 0 : index
    %c0_9 = arith.constant 0 : index
    %10 = vector.load %arg5[%c0_6, %c0_7, %c0_8, %c0_9] : memref<1x3x8x128xf32, #tpu.memory_space<vmem>>, vector<1x1x8x128xf32>
    %11 = vector.shape_cast %10 : vector<1x1x8x128xf32> to vector<8x128xf32>
    %12 = arith.mulf %9, %9 : vector<16x128xf32>
    %13 = vector.shape_cast %12 : vector<16x128xf32> to vector<2x8x128xf32>
    %cst_10 = arith.constant dense<0.000000e+00> : vector<8x128xf32>
    %14 = vector.multi_reduction <add>, %13, %cst_10 [0] : vector<2x8x128xf32> to vector<8x128xf32>
    %15 = arith.addf %11, %14 : vector<8x128xf32>
    %c0_11 = arith.constant 0 : index
    %c0_12 = arith.constant 0 : index
    %c0_13 = arith.constant 0 : index
    %c0_14 = arith.constant 0 : index
    %16 = vector.load %arg5[%c0_11, %c0_12, %c0_13, %c0_14] : memref<1x3x8x128xf32, #tpu.memory_space<vmem>>, vector<1x1x8x128xf32>
    %17 = vector.shape_cast %16 : vector<1x1x8x128xf32> to vector<8x128xf32>
    %18 = vector.shape_cast %15 : vector<8x128xf32> to vector<1x1x8x128xf32>
    tpu.vector_store %arg5[%c0_11, %c0_12, %c0_13, %c0_14], %18 {strides = array<i32>} : memref<1x3x8x128xf32, #tpu.memory_space<vmem>>, vector<1x1x8x128xf32>,
    %c0_15 = arith.constant 0 : index
    %c1 = arith.constant 1 : index
    %c0_16 = arith.constant 0 : index
    %c0_17 = arith.constant 0 : index
    %19 = vector.load %arg5[%c0_15, %c1, %c0_16, %c0_17] : memref<1x3x8x128xf32, #tpu.memory_space<vmem>>, vector<1x1x8x128xf32>
    %20 = vector.shape_cast %19 : vector<1x1x8x128xf32> to vector<8x128xf32>
    %21 = vector.shape_cast %8 : vector<16x128xf32> to vector<2x8x128xf32>
    %cst_18 = arith.constant dense<0.000000e+00> : vector<8x128xf32>
    %22 = vector.multi_reduction <add>, %21, %cst_18 [0] : vector<2x8x128xf32> to vector<8x128xf32>
    %23 = arith.addf %20, %22 : vector<8x128xf32>
    %c0_19 = arith.constant 0 : index
    %c1_20 = arith.constant 1 : index
    %c0_21 = arith.constant 0 : index
    %c0_22 = arith.constant 0 : index
    %24 = vector.load %arg5[%c0_19, %c1_20, %c0_21, %c0_22] : memref<1x3x8x128xf32, #tpu.memory_space<vmem>>, vector<1x1x8x128xf32>
    %25 = vector.shape_cast %24 : vector<1x1x8x128xf32> to vector<8x128xf32>
    %26 = vector.shape_cast %23 : vector<8x128xf32> to vector<1x1x8x128xf32>
    tpu.vector_store %arg5[%c0_19, %c1_20, %c0_21, %c0_22], %26 {strides = array<i32>} : memref<1x3x8x128xf32, #tpu.memory_space<vmem>>, vector<1x1x8x128xf32>,
    %c0_23 = arith.constant 0 : index
    %c2 = arith.constant 2 : index
    %c0_24 = arith.constant 0 : index
    %c0_25 = arith.constant 0 : index
    %27 = vector.load %arg5[%c0_23, %c2, %c0_24, %c0_25] : memref<1x3x8x128xf32, #tpu.memory_space<vmem>>, vector<1x1x8x128xf32>
    %28 = vector.shape_cast %27 : vector<1x1x8x128xf32> to vector<8x128xf32>
    %29 = vector.shape_cast %5 : vector<16x128xf32> to vector<2x8x128xf32>
    %cst_26 = arith.constant dense<0.000000e+00> : vector<8x128xf32>
    %30 = vector.multi_reduction <add>, %29, %cst_26 [0] : vector<2x8x128xf32> to vector<8x128xf32>
    %31 = arith.addf %28, %30 : vector<8x128xf32>
    %c0_27 = arith.constant 0 : index
    %c2_28 = arith.constant 2 : index
    %c0_29 = arith.constant 0 : index
    %c0_30 = arith.constant 0 : index
    %32 = vector.load %arg5[%c0_27, %c2_28, %c0_29, %c0_30] : memref<1x3x8x128xf32, #tpu.memory_space<vmem>>, vector<1x1x8x128xf32>
    %33 = vector.shape_cast %32 : vector<1x1x8x128xf32> to vector<8x128xf32>
    %34 = vector.shape_cast %31 : vector<8x128xf32> to vector<1x1x8x128xf32>
    tpu.vector_store %arg5[%c0_27, %c2_28, %c0_29, %c0_30], %34 {strides = array<i32>} : memref<1x3x8x128xf32, #tpu.memory_space<vmem>>, vector<1x1x8x128xf32>,
    return
  }
  func.func @transform_0(%arg0: i32, %arg1: i32) -> (i32, i32) {
    %c1_i32 = arith.constant 1 : i32
    %0 = arith.muli %arg0, %c1_i32 : i32
    %1 = arith.addi %0, %arg1 : i32
    %c0_i32 = arith.constant 0 : i32
    %c0_i32_0 = arith.constant 0 : i32
    return %1, %c0_i32 : i32, i32
  }
  func.func @transform_1(%arg0: i32, %arg1: i32) -> (i32, i32) {
    %c1_i32 = arith.constant 1 : i32
    %0 = arith.muli %arg0, %c1_i32 : i32
    %1 = arith.addi %0, %arg1 : i32
    %c0_i32 = arith.constant 0 : i32
    %c0_i32_0 = arith.constant 0 : i32
    return %1, %c0_i32 : i32, i32
  }
  func.func @transform_2(%arg0: i32, %arg1: i32) -> (i32, i32) {
    %c1_i32 = arith.constant 1 : i32
    %0 = arith.muli %arg0, %c1_i32 : i32
    %1 = arith.addi %0, %arg1 : i32
    %c0_i32 = arith.constant 0 : i32
    %c0_i32_0 = arith.constant 0 : i32
    return %1, %c0_i32 : i32, i32
  }
  func.func @transform_3(%arg0: i32, %arg1: i32) -> (i32, i32, i32, i32) {
    %c0_i32 = arith.constant 0 : i32
    %c0_i32_0 = arith.constant 0 : i32
    %c0_i32_1 = arith.constant 0 : i32
    %c0_i32_2 = arith.constant 0 : i32
    return %arg0, %c0_i32, %c0_i32_0, %c0_i32_1 : i32, i32, i32, i32
  }
}

</mosaic_0001>

<llo_original>
// kernel: tpu_custom_call.1
$region0: #{tpu_custom_call.1}
  #allocation0 [shape = 'u32[]', space=smem, size = 0x4, offset = 0x4, fixed_abs, tag = 'smem constant byte address 0x4 - core index']
  #allocation1 [shape = 'u32[144,128]{1,0:T(1,128)}', space=vmem, size = 0x12000, scoped, tag = 'internal scratch']
  %s0 = inlined_call_operand.hbm [shape: f32[16,128], index: 0, kind: input, shape index: {}]
  %s1 = inlined_call_operand.hbm [shape: f32[16,128], index: 1, kind: input, shape index: {}]
  %s2 = inlined_call_operand.hbm [shape: f32[16,128], index: 2, kind: input, shape index: {}]
  %s3 = inlined_call_operand.hbm [shape: f32[1,3,8,128], index: 3, kind: output, shape index: {}]
  %s4 = sld [smem:[#allocation0]]
  $region38: #{tpu_custom_call.1} parent=0
    _
  %s6 = ssub.s32 1, %s4
  %s7 = scalar_select 0, %s6, %s4
  $region1: #{tpu_custom_call.1} parent=0
    #allocation2 [shape = 'u8[8192]{0}', space=vmem, size = 0x2000, scoped, tag = 'input window, operand 0, single buffered']
    #allocation3 [shape = 's32[1]{0}', space=sflag, size = 0x4, scoped, tag = 'scoped memory for tpu_custom_call.1']
    #allocation4 [shape = 's32[1]{0}', space=sflag, size = 0x4, scoped, tag = 'scoped memory for tpu_custom_call.1']
    #allocation5 [shape = 'u8[8192]{0}', space=vmem, size = 0x2000, scoped, tag = 'input window, operand 1, single buffered']
    #allocation6 [shape = 's32[1]{0}', space=sflag, size = 0x4, scoped, tag = 'scoped memory for tpu_custom_call.1']
    #allocation7 [shape = 'u8[8192]{0}', space=vmem, size = 0x2000, scoped, tag = 'input window, operand 2, single buffered']
    #allocation8 [shape = 'u8[12288]{0}', space=vmem, size = 0x3000, scoped, tag = 'output window, operand 0, single buffered']
    %8 = vsyncpa [#allocation3], 0
    %9 = vsyncpa [#allocation6], 0
    %10 = vsyncpa [#allocation4], 0
    // Predicated region
    $region2: #{tpu_custom_call.1} parent=1 // pred_check
      _
    $region3: #{tpu_custom_call.1} parent=1 // pred_check_branch
      %12 = sbr.rel (0) target = $region5
    $region4: #{tpu_custom_call.1} parent=1 // pred_region
      %s13 = sadd.s32 0, 0
      %s14 = smul.u32 2, %s13
      %s16 = ssub.s32 256, 256
      %17 = vsyncadd [#allocation3], %s16
      %s18 = smul.addr %s14, 128
      %s19 = scalar_lea.hbm %s0, %s18
      %s20 = sshll.u32 [#allocation2], 4
      %s21 = int_to_ptr.vmem [resolvable:$true] %s20
      %26 = dma.hbm_to_vmem [thread:$0]  %s19, 256, %s21, [#allocation3], 128, 128, 8
    $region5: #{tpu_custom_call.1} parent=1 // pred_fallthru
      _
    // Predicated region
    $region6: #{tpu_custom_call.1} parent=1 // pred_check
      _
    $region7: #{tpu_custom_call.1} parent=1 // pred_check_branch
      %28 = sbr.rel (0) target = $region9
    $region8: #{tpu_custom_call.1} parent=1 // pred_region
      %s29 = sadd.s32 0, 0
      %s30 = smul.u32 2, %s29
      %s32 = ssub.s32 256, 256
      %33 = vsyncadd [#allocation6], %s32
      %s34 = smul.addr %s30, 128
      %s35 = scalar_lea.hbm %s1, %s34
      %s36 = sshll.u32 [#allocation5], 4
      %s37 = int_to_ptr.vmem [resolvable:$true] %s36
      %42 = dma.hbm_to_vmem [thread:$0]  %s35, 256, %s37, [#allocation6], 128, 128, 8
    $region9: #{tpu_custom_call.1} parent=1 // pred_fallthru
      _
    // Predicated region
    $region10: #{tpu_custom_call.1} parent=1 // pred_check
      _
    $region11: #{tpu_custom_call.1} parent=1 // pred_check_branch
      %44 = sbr.rel (0) target = $region13
    $region12: #{tpu_custom_call.1} parent=1 // pred_region
      %s45 = sadd.s32 0, 0
      %s46 = smul.u32 2, %s45
      %s48 = ssub.s32 256, 256
      %49 = vsyncadd [#allocation6], %s48
      %s50 = smul.addr %s46, 128
      %s51 = scalar_lea.hbm %s2, %s50
      %s52 = sshll.u32 [#allocation7], 4
      %s53 = int_to_ptr.vmem [resolvable:$true] %s52
      %58 = dma.hbm_to_vmem [thread:$0]  %s51, 256, %s53, [#allocation6], 128, 128, 8
    $region13: #{tpu_custom_call.1} parent=1 // pred_fallthru
      _
    // Predicated region
    $region14: #{tpu_custom_call.1} parent=1 // pred_check
      _
    $region15: #{tpu_custom_call.1} parent=1 // pred_check_branch
      %60 = sbr.rel (0) target = $region17
    $region16: #{tpu_custom_call.1} parent=1 // pred_region
      %61 = dma.done [#allocation3], 256
    $region17: #{tpu_custom_call.1} parent=1 // pred_fallthru
      _
    // Predicated region
    $region18: #{tpu_custom_call.1} parent=1 // pred_check
      _
    $region19: #{tpu_custom_call.1} parent=1 // pred_check_branch
      %63 = sbr.rel (0) target = $region21
    $region20: #{tpu_custom_call.1} parent=1 // pred_region
      %64 = dma.done [#allocation6], 256
    $region21: #{tpu_custom_call.1} parent=1 // pred_fallthru
      _
    // Predicated region
    $region22: #{tpu_custom_call.1} parent=1 // pred_check
      _
    $region23: #{tpu_custom_call.1} parent=1 // pred_check_branch
      %66 = sbr.rel (0) target = $region25
    $region24: #{tpu_custom_call.1} parent=1 // pred_region
      %67 = dma.done [#allocation6], 256
    $region25: #{tpu_custom_call.1} parent=1 // pred_fallthru
      _
    %s68 = sadd.s32 0, 0
    %s69 = smul.u32 2, %s68
    %s70 = sadd.s32 0, 0
    %s71 = smul.u32 2, %s70
    %s72 = sadd.s32 0, 0
    %s73 = smul.u32 2, %s72
    %p74 = scmp.eq.s32.totalorder 0, 0
    // Predicated region
    $region26: #{tpu_custom_call.1} parent=1 // pred_check
      %p75 = pneg %p74
    $region27: #{tpu_custom_call.1} parent=1 // pred_check_branch
      %77 = sbr.rel (%p75) target = $region29
    $region28: #{tpu_custom_call.1} parent=1 // pred_region
      %78 = vst [vmem:[#allocation8] sm:$0xff] 0.0
      %79 = vst [vmem:[#allocation8 + $0x8] sm:$0xff] 0.0
      %80 = vst [vmem:[#allocation8 + $0x10] sm:$0xff] 0.0
    $region29: #{tpu_custom_call.1} parent=1 // pred_fallthru
      _
    %v81 = vld [vmem:[#allocation2] sm:$0xff]
    %v82 = vld [vmem:[#allocation2 + $0x8] sm:$0xff]
    %v83 = vld [vmem:[#allocation5] sm:$0xff]
    %v84 = vld [vmem:[#allocation5 + $0x8] sm:$0xff]
    %v85 = vld [vmem:[#allocation7] sm:$0xff]
    %v86 = vld [vmem:[#allocation7 + $0x8] sm:$0xff]
    %v87 = vsub.f32 0.0, %v85
    %v88 = vsub.f32 0.0, %v86
    %v89 = vmul.f32 %v87, 1.442695
    %v90 = vpow.pop %v89
    %v91 = vmul.f32 %v88, 1.442695
    %v92 = vpow.pop %v91
    %v93 = vsub.f32 %v81, %v83
    %v94 = vsub.f32 %v82, %v84
    %v95 = vld [vmem:[#allocation8] sm:$0xff]
    %v96 = vmul.f32 %v93, %v93
    %v97 = vmul.f32 %v94, %v94
    %v98 = vadd.f32 %v96, %v97
    %v99 = vadd.f32 %v95, %v98
    %100 = vst [vmem:[#allocation8] sm:$0xff] %v99
    %s101 = scalar_lea.vmem [#allocation8], 8
    %v102 = vld [vmem:[%s101] sm:$0xff]
    %v103 = vadd.f32 %v90, %v92
    %v104 = vadd.f32 %v102, %v103
    %105 = vst [vmem:[%s101] sm:$0xff] %v104
    %s106 = scalar_lea.vmem [#allocation8], 16
    %v107 = vld [vmem:[%s106] sm:$0xff]
    %v108 = vadd.f32 %v85, %v86
    %v109 = vadd.f32 %v107, %v108
    %110 = vst [vmem:[%s106] sm:$0xff] %v109
    // Predicated region
    $region30: #{tpu_custom_call.1} parent=1 // pred_check
      _
    $region31: #{tpu_custom_call.1} parent=1 // pred_check_branch
      %112 = sbr.rel (0) target = $region33
    $region32: #{tpu_custom_call.1} parent=1 // pred_region
      %s114 = ssub.s32 384, 384
      %115 = vsyncadd [#allocation4], %s114
      %s116 = sshll.u32 [#allocation8], 4
      %s117 = int_to_ptr.vmem [resolvable:$true] %s116
      %122 = dma.vmem_to_hbm [thread:$0]  %s117, 384, %s3, [#allocation4], 128, 128, 8
    $region33: #{tpu_custom_call.1} parent=1 // pred_fallthru
      _
    // Predicated region
    $region34: #{tpu_custom_call.1} parent=1 // pred_check
      _
    $region35: #{tpu_custom_call.1} parent=1 // pred_check_branch
      %124 = sbr.rel (0) target = $region37
    $region36: #{tpu_custom_call.1} parent=1 // pred_region
      %125 = dma.done [#allocation4], 384
    $region37: #{tpu_custom_call.1} parent=1 // pred_fallthru
      _
    %126 = vsyncpa [#allocation3], 1
    %127 = vsyncpa [#allocation6], 1
    %128 = vsyncpa [#allocation4], 1

</llo_original>
